<compile_context>
chip_gen: v7x
topology: tpu7x:2x2x1
jax: 0.10.0
libtpu: 0.0.40
codegen_flags: <defaults>
</compile_context>

<pallas_src>
import jax
import jax.numpy as jnp
from jax.experimental import pallas as pl
from jax.experimental.pallas import tpu as pltpu


def _round_up(n: int, m: int) -> int:
    return (n + m - 1) // m * m


def mlp_kernel(x_ref, w1_ref, b1_ref, w2_ref, b2_ref, w3_ref, b3_ref, o_ref):
    x = x_ref[...]                                                    # (TB, 305) f32
    # fc1 + tanh : f32 MXU accumulation
    h1 = jnp.tanh(
        jnp.dot(x, w1_ref[...], preferred_element_type=jnp.float32) + b1_ref[...]
    )                                                                 # (TB, 30)
    # fc2 + tanh
    h2 = jnp.tanh(
        jnp.dot(h1, w2_ref[...], preferred_element_type=jnp.float32) + b2_ref[...]
    )                                                                 # (TB, 30)
    # fc3 + sigmoid
    logits = (
        jnp.dot(h2, w3_ref[...], preferred_element_type=jnp.float32) + b3_ref[...]
    )                                                                 # (TB, 1)
    # TODO(synk): logits/o_ref stay (TB, 1) (sublane-major, masked 1-lane
    # stores).  Output bytes are <0.4% of the x stream and the masked-store /
    # sigmoid EUP cost stays well under the per-tile x DMA time, so the
    # lane-dense relayout ((TB,1) -> (TB//128,128)) was skipped to avoid an
    # unsupported in-kernel reshape/lowering risk.
    o_ref[...] = jax.nn.sigmoid(logits).astype(o_ref.dtype)


def _choose_tb(B: int, block_b: int) -> int:
    tb = min(block_b, _round_up(max(B, 1), 8))
    # Prefer >= 2 grid steps for non-tiny batches so the "parallel" batch axis
    # can shard across both TensorCores on v7x (no-op on v5e/v6e).
    if B > 16 and _round_up(B, tb) // tb < 2:
        tb = _round_up((B + 1) // 2, 8)
    return tb


def mlp_forward(x, w1, b1, w2, b2, w3, b3, *, block_b: int = 2048):
    """x: (B, 305) f32.  Weights stored as (in, out); biases as (1, out)."""
    B, K = x.shape
    H1 = w1.shape[1]                               # 30
    H2 = w2.shape[1]                               # 30

    TB = _choose_tb(B, block_b)
    B_pad = _round_up(B, TB)
    # Only touch x if the batch needs rounding up to the tile size.
    x_in = x if B_pad == B else jnp.pad(x, ((0, B_pad - B), (0, 0)))

    grid = (B_pad // TB,)
    const = lambda shape: pl.BlockSpec(shape, lambda i: (0,) * len(shape))

    flops = 2 * B_pad * (K * H1 + H1 * H2 + H2 * 1)
    transcendentals = B_pad * (H1 + H2 + 1)
    bytes_accessed = (x_in.size * 4 + B_pad * 4
                      + (w1.size + w2.size + w3.size
                         + b1.size + b2.size + b3.size) * 4)

    out_pad = pl.pallas_call(
        mlp_kernel,
        out_shape=jax.ShapeDtypeStruct((B_pad, 1), jnp.float32),
        grid=grid,
        in_specs=[
            pl.BlockSpec((TB, K), lambda i: (i, 0)),   # x streams over batch (f32)
            const((K, H1)), const((1, H1)),            # fc1 (VMEM-resident)
            const((H1, H2)), const((1, H2)),           # fc2 (VMEM-resident)
            const((H2, 1)), const((1, 1)),             # fc3 (VMEM-resident)
        ],
        out_specs=pl.BlockSpec((TB, 1), lambda i: (i, 0)),
        compiler_params=pltpu.CompilerParams(
            dimension_semantics=("parallel",)),
        cost_estimate=pl.CostEstimate(
            flops=flops,
            transcendentals=transcendentals,
            bytes_accessed=bytes_accessed),
    )(x_in, w1, b1, w2, b2, w3, b3)
    return out_pad[:B]


def init_params(key):
    """PyTorch nn.Linear default init (uniform +-1/sqrt(fan_in)), weights (in, out)."""
    def linear(k, fan_in, fan_out):
        kw, kb = jax.random.split(k)
        bound = 1.0 / jnp.sqrt(fan_in)
        w = jax.random.uniform(kw, (fan_in, fan_out), jnp.float32, -bound, bound)
        b = jax.random.uniform(kb, (1, fan_out), jnp.float32, -bound, bound)
        return w, b

    k1, k2, k3 = jax.random.split(key, 3)
    w1, b1 = linear(k1, 305, 30)
    w2, b2 = linear(k2, 30, 30)
    w3, b3 = linear(k3, 30, 1)
    return w1, b1, w2, b2, w3, b3


def _reference(x, w1, b1, w2, b2, w3, b3):
    return jax.nn.sigmoid(jnp.tanh(jnp.tanh(x @ w1 + b1) @ w2 + b2) @ w3 + b3)


if __name__ == "__main__":
    key = jax.random.PRNGKey(0)
    k_params, k_x1, k_x2 = jax.random.split(key, 3)
    params = init_params(k_params)

    # Small shape consistent with the module (batch=8, features=305).
    B = 8
    x = jax.random.normal(k_x1, (B, 305), jnp.float32)
    out = jax.block_until_ready(mlp_forward(x, *params))
    assert out.shape == (B, 1)
    ref = _reference(x, *params)
    assert jnp.allclose(out, ref, atol=1e-4), "mismatch vs f32 reference (B=8)"

    # Exercise the batch-padding + multi-step-grid path (B not a tile multiple).
    B2 = 300
    x2 = jax.random.normal(k_x2, (B2, 305), jnp.float32)
    out2 = jax.block_until_ready(mlp_forward(x2, *params))
    assert out2.shape == (B2, 1)
    ref2 = _reference(x2, *params)
    assert jnp.allclose(out2, ref2, atol=1e-4), "mismatch vs f32 reference (B=300)"

    print("KERNEL_OK")
</pallas_src>

<mosaic_0001>
module attributes {stable_mosaic.version = 11 : i64} {
  func.func @mlp_kernel(%arg0: i32, %arg1: memref<8x305xf32, #tpu.memory_space<vmem>>, %arg2: memref<305x30xf32, #tpu.memory_space<vmem>>, %arg3: memref<1x30xf32, #tpu.memory_space<vmem>>, %arg4: memref<30x30xf32, #tpu.memory_space<vmem>>, %arg5: memref<1x30xf32, #tpu.memory_space<vmem>>, %arg6: memref<30x1xf32, #tpu.memory_space<vmem>>, %arg7: memref<1x1xf32, #tpu.memory_space<vmem>>, %arg8: memref<8x1xf32, #tpu.memory_space<vmem>>) attributes {dimension_semantics = [#tpu.dimension_semantics<parallel>], iteration_bounds = array<i64: 1>, scalar_prefetch = 0 : i64, scratch_operands = 0 : i64, tpu.core_type = #tpu.core_type<tc>, window_params = [{transform_indices = @transform_0, window_bounds = array<i64: 8, 305>}, {pipeline_mode = #tpu.pipeline_mode<synchronous>, transform_indices = @transform_1, window_bounds = array<i64: 305, 30>}, {pipeline_mode = #tpu.pipeline_mode<synchronous>, transform_indices = @transform_2, window_bounds = array<i64: 1, 30>}, {pipeline_mode = #tpu.pipeline_mode<synchronous>, transform_indices = @transform_3, window_bounds = array<i64: 30, 30>}, {pipeline_mode = #tpu.pipeline_mode<synchronous>, transform_indices = @transform_4, window_bounds = array<i64: 1, 30>}, {pipeline_mode = #tpu.pipeline_mode<synchronous>, transform_indices = @transform_5, window_bounds = array<i64: 30, 1>}, {pipeline_mode = #tpu.pipeline_mode<synchronous>, transform_indices = @transform_6, window_bounds = array<i64: 1, 1>}, {transform_indices = @transform_7, window_bounds = array<i64: 8, 1>}]} {
    %c0 = arith.constant 0 : index
    %c0_0 = arith.constant 0 : index
    %0 = vector.load %arg1[%c0, %c0_0] : memref<8x305xf32, #tpu.memory_space<vmem>>, vector<8x305xf32>
    %c0_1 = arith.constant 0 : index
    %c0_2 = arith.constant 0 : index
    %1 = vector.load %arg2[%c0_1, %c0_2] : memref<305x30xf32, #tpu.memory_space<vmem>>, vector<305x30xf32>
    %cst = arith.constant dense<0.000000e+00> : vector<8x30xf32>
    %2 = tpu.matmul %0, %1, %cst {dimension_numbers = #tpu.dot_dimension_numbers<[1], [0], [0], [1], [0, 0, 1, 1], [], []>} : vector<8x305xf32>, vector<305x30xf32>, vector<8x30xf32> -> vector<8x30xf32>
    %c0_3 = arith.constant 0 : index
    %c0_4 = arith.constant 0 : index
    %3 = vector.load %arg3[%c0_3, %c0_4] : memref<1x30xf32, #tpu.memory_space<vmem>>, vector<1x30xf32>
    %4 = vector.broadcast %3 : vector<1x30xf32> to vector<8x30xf32>
    %5 = arith.addf %2, %4 : vector<8x30xf32>
    %6 = math.tanh %5 : vector<8x30xf32>
    %c0_5 = arith.constant 0 : index
    %c0_6 = arith.constant 0 : index
    %7 = vector.load %arg4[%c0_5, %c0_6] : memref<30x30xf32, #tpu.memory_space<vmem>>, vector<30x30xf32>
    %cst_7 = arith.constant dense<0.000000e+00> : vector<8x30xf32>
    %8 = tpu.matmul %6, %7, %cst_7 {dimension_numbers = #tpu.dot_dimension_numbers<[1], [0], [0], [1], [0, 0, 1, 1], [], []>} : vector<8x30xf32>, vector<30x30xf32>, vector<8x30xf32> -> vector<8x30xf32>
    %c0_8 = arith.constant 0 : index
    %c0_9 = arith.constant 0 : index
    %9 = vector.load %arg5[%c0_8, %c0_9] : memref<1x30xf32, #tpu.memory_space<vmem>>, vector<1x30xf32>
    %10 = vector.broadcast %9 : vector<1x30xf32> to vector<8x30xf32>
    %11 = arith.addf %8, %10 : vector<8x30xf32>
    %12 = math.tanh %11 : vector<8x30xf32>
    %c0_10 = arith.constant 0 : index
    %c0_11 = arith.constant 0 : index
    %13 = vector.load %arg6[%c0_10, %c0_11] : memref<30x1xf32, #tpu.memory_space<vmem>>, vector<30x1xf32>
    %cst_12 = arith.constant dense<0.000000e+00> : vector<8x1xf32>
    %14 = tpu.matmul %12, %13, %cst_12 {dimension_numbers = #tpu.dot_dimension_numbers<[1], [0], [0], [1], [0, 0, 1, 1], [], []>} : vector<8x30xf32>, vector<30x1xf32>, vector<8x1xf32> -> vector<8x1xf32>
    %c0_13 = arith.constant 0 : index
    %c0_14 = arith.constant 0 : index
    %15 = vector.load %arg7[%c0_13, %c0_14] : memref<1x1xf32, #tpu.memory_space<vmem>>, vector<1x1xf32>
    %16 = vector.broadcast %15 : vector<1x1xf32> to vector<8x1xf32>
    %17 = arith.addf %14, %16 : vector<8x1xf32>
    %18 = arith.negf %17 : vector<8x1xf32>
    %19 = math.exp %18 : vector<8x1xf32>
    %cst_15 = arith.constant 1.000000e+00 : f32
    %20 = vector.broadcast %cst_15 : f32 to vector<8x1xf32>
    %21 = arith.addf %20, %19 : vector<8x1xf32>
    %22 = arith.divf %20, %21 : vector<8x1xf32>
    %c0_16 = arith.constant 0 : index
    %c0_17 = arith.constant 0 : index
    %23 = vector.load %arg8[%c0_16, %c0_17] : memref<8x1xf32, #tpu.memory_space<vmem>>, vector<8x1xf32>
    tpu.vector_store %arg8[%c0_16, %c0_17], %22 {strides = array<i32>} : memref<8x1xf32, #tpu.memory_space<vmem>>, vector<8x1xf32>,
    return
  }
  func.func @transform_0(%arg0: i32) -> (i32, i32) {
    %c0_i32 = arith.constant 0 : i32
    %c0_i32_0 = arith.constant 0 : i32
    return %arg0, %c0_i32 : i32, i32
  }
  func.func @transform_1(%arg0: i32) -> (i32, i32) {
    %c0_i32 = arith.constant 0 : i32
    %c0_i32_0 = arith.constant 0 : i32
    %c0_i32_1 = arith.constant 0 : i32
    return %c0_i32, %c0_i32_0 : i32, i32
  }
  func.func @transform_2(%arg0: i32) -> (i32, i32) {
    %c0_i32 = arith.constant 0 : i32
    %c0_i32_0 = arith.constant 0 : i32
    %c0_i32_1 = arith.constant 0 : i32
    return %c0_i32, %c0_i32_0 : i32, i32
  }
  func.func @transform_3(%arg0: i32) -> (i32, i32) {
    %c0_i32 = arith.constant 0 : i32
    %c0_i32_0 = arith.constant 0 : i32
    %c0_i32_1 = arith.constant 0 : i32
    return %c0_i32, %c0_i32_0 : i32, i32
  }
  func.func @transform_4(%arg0: i32) -> (i32, i32) {
    %c0_i32 = arith.constant 0 : i32
    %c0_i32_0 = arith.constant 0 : i32
    %c0_i32_1 = arith.constant 0 : i32
    return %c0_i32, %c0_i32_0 : i32, i32
  }
  func.func @transform_5(%arg0: i32) -> (i32, i32) {
    %c0_i32 = arith.constant 0 : i32
    %c0_i32_0 = arith.constant 0 : i32
    %c0_i32_1 = arith.constant 0 : i32
    return %c0_i32, %c0_i32_0 : i32, i32
  }
  func.func @transform_6(%arg0: i32) -> (i32, i32) {
    %c0_i32 = arith.constant 0 : i32
    %c0_i32_0 = arith.constant 0 : i32
    %c0_i32_1 = arith.constant 0 : i32
    return %c0_i32, %c0_i32_0 : i32, i32
  }
  func.func @transform_7(%arg0: i32) -> (i32, i32) {
    %c0_i32 = arith.constant 0 : i32
    %c0_i32_0 = arith.constant 0 : i32
    return %arg0, %c0_i32 : i32, i32
  }
}

</mosaic_0001>

<llo_original>
// kernel: tpu_custom_call.1
$region0: #{tpu_custom_call.1}
  #allocation0 [shape = 'u32[]', space=smem, size = 0x4, offset = 0x4, fixed_abs, tag = 'smem constant byte address 0x4 - core index']
  #allocation1 [shape = 'u32[144,128]{1,0:T(1,128)}', space=vmem, size = 0x12000, scoped, tag = 'internal scratch']
  #allocation2 [shape = 'f32[1,1]{1,0:T(1,128)S(1)}', space=vmem, size = 0x200, scoped, tag = 'scoped memory for tpu_custom_call.1']
  %s0 = inlined_call_operand.vmem [shape: f32[8,305], index: 0, kind: input, shape index: {}]
  %s1 = inlined_call_operand.vmem [shape: f32[305,30], index: 1, kind: input, shape index: {}]
  %s2 = inlined_call_operand.vmem [shape: f32[1,30], index: 2, kind: input, shape index: {}]
  %s3 = inlined_call_operand.vmem [shape: f32[30,30], index: 3, kind: input, shape index: {}]
  %s4 = inlined_call_operand.vmem [shape: f32[1,30], index: 4, kind: input, shape index: {}]
  %s5 = inlined_call_operand.vmem [shape: f32[30,1], index: 5, kind: input, shape index: {}]
  %s6 = inlined_call_operand.<no memory space> [shape: f32[1,1], index: 6, kind: input, shape index: {}]
  %s7 = inlined_call_operand.vmem [shape: f32[8,1], index: 7, kind: output, shape index: {}]
  %s8 = sld [smem:[#allocation0]]
  $region38: #{tpu_custom_call.1} parent=0
    _
  %s10 = ssub.s32 1, %s8
  %s11 = scalar_select 0, %s10, %s8
  %v12 = vstv %s6
  %13 = vst [vmem:[#allocation2] sm:$0x1] %v12
  // Predicated region
  $region2: #{tpu_custom_call.1} parent=0 // pred_check
    _
  $region3: #{tpu_custom_call.1} parent=0 // pred_check_branch
    %15 = sbr.rel (0) target = $region5
  $region4: #{tpu_custom_call.1} parent=0 // pred_region
    _
  $region5: #{tpu_custom_call.1} parent=0 // pred_fallthru
    _
  // Predicated region
  $region6: #{tpu_custom_call.1} parent=0 // pred_check
    _
  $region7: #{tpu_custom_call.1} parent=0 // pred_check_branch
    %17 = sbr.rel (0) target = $region9
  $region8: #{tpu_custom_call.1} parent=0 // pred_region
    _
  $region9: #{tpu_custom_call.1} parent=0 // pred_fallthru
    _
  // Predicated region
  $region10: #{tpu_custom_call.1} parent=0 // pred_check
    _
  $region11: #{tpu_custom_call.1} parent=0 // pred_check_branch
    %19 = sbr.rel (0) target = $region13
  $region12: #{tpu_custom_call.1} parent=0 // pred_region
    _
  $region13: #{tpu_custom_call.1} parent=0 // pred_fallthru
    _
  // Predicated region
  $region14: #{tpu_custom_call.1} parent=0 // pred_check
    _
  $region15: #{tpu_custom_call.1} parent=0 // pred_check_branch
    %21 = sbr.rel (0) target = $region17
  $region16: #{tpu_custom_call.1} parent=0 // pred_region
    _
  $region17: #{tpu_custom_call.1} parent=0 // pred_fallthru
    _
  // Predicated region
  $region18: #{tpu_custom_call.1} parent=0 // pred_check
    _
  $region19: #{tpu_custom_call.1} parent=0 // pred_check_branch
    %23 = sbr.rel (0) target = $region21
  $region20: #{tpu_custom_call.1} parent=0 // pred_region
    _
  $region21: #{tpu_custom_call.1} parent=0 // pred_fallthru
    _
  // Predicated region
  $region22: #{tpu_custom_call.1} parent=0 // pred_check
    _
  $region23: #{tpu_custom_call.1} parent=0 // pred_check_branch
    %25 = sbr.rel (0) target = $region25
  $region24: #{tpu_custom_call.1} parent=0 // pred_region
    _
  $region25: #{tpu_custom_call.1} parent=0 // pred_fallthru
    _
  // Predicated region
  $region26: #{tpu_custom_call.1} parent=0 // pred_check
    _
  $region27: #{tpu_custom_call.1} parent=0 // pred_check_branch
    %27 = sbr.rel (0) target = $region29
  $region28: #{tpu_custom_call.1} parent=0 // pred_region
    _
  $region29: #{tpu_custom_call.1} parent=0 // pred_fallthru
    _
  %v28 = vld [vmem:[%s0] sm:$0xff]
  %v29 = vld [vmem:[%s0 + $0x8] sm:$0xff]
  %v30 = vld [vmem:[%s0 + $0x10] sm:$0xff]
  %v31 = vld [vmem:[%s1] sm:$0xff]
  %v32 = vld [vmem:[%s1 + $0x8] sm:$0xff]
  %v33 = vld [vmem:[%s1 + $0x10] sm:$0xff]
  %v34 = vld [vmem:[%s1 + $0x18] sm:$0xff]
  %v35 = vld [vmem:[%s1 + $0x20] sm:$0xff]
  %v36 = vld [vmem:[%s1 + $0x28] sm:$0xff]
  %v37 = vld [vmem:[%s1 + $0x30] sm:$0xff]
  %v38 = vld [vmem:[%s1 + $0x38] sm:$0xff]
  %v39 = vld [vmem:[%s1 + $0x40] sm:$0xff]
  %v40 = vld [vmem:[%s1 + $0x48] sm:$0xff]
  %v41 = vld [vmem:[%s1 + $0x50] sm:$0xff]
  %v42 = vld [vmem:[%s1 + $0x58] sm:$0xff]
  %v43 = vld [vmem:[%s1 + $0x60] sm:$0xff]
  %v44 = vld [vmem:[%s1 + $0x68] sm:$0xff]
  %v45 = vld [vmem:[%s1 + $0x70] sm:$0xff]
  %v46 = vld [vmem:[%s1 + $0x78] sm:$0xff]
  %v47 = vld [vmem:[%s1 + $0x80] sm:$0xff]
  %v48 = vld [vmem:[%s1 + $0x88] sm:$0xff]
  %v49 = vld [vmem:[%s1 + $0x90] sm:$0xff]
  %v50 = vld [vmem:[%s1 + $0x98] sm:$0xff]
  %v51 = vld [vmem:[%s1 + $0xa0] sm:$0xff]
  %v52 = vld [vmem:[%s1 + $0xa8] sm:$0xff]
  %v53 = vld [vmem:[%s1 + $0xb0] sm:$0xff]
  %v54 = vld [vmem:[%s1 + $0xb8] sm:$0xff]
  %v55 = vld [vmem:[%s1 + $0xc0] sm:$0xff]
  %v56 = vld [vmem:[%s1 + $0xc8] sm:$0xff]
  %v57 = vld [vmem:[%s1 + $0xd0] sm:$0xff]
  %v58 = vld [vmem:[%s1 + $0xd8] sm:$0xff]
  %v59 = vld [vmem:[%s1 + $0xe0] sm:$0xff]
  %v60 = vld [vmem:[%s1 + $0xe8] sm:$0xff]
  %v61 = vld [vmem:[%s1 + $0xf0] sm:$0xff]
  %v62 = vld [vmem:[%s1 + $0xf8] sm:$0xff]
  %v63 = vld [vmem:[%s1 + $0x100] sm:$0xff]
  %v64 = vld [vmem:[%s1 + $0x108] sm:$0xff]
  %v65 = vld [vmem:[%s1 + $0x110] sm:$0xff]
  %v66 = vld [vmem:[%s1 + $0x118] sm:$0xff]
  %v67 = vld [vmem:[%s1 + $0x120] sm:$0xff]
  %v68 = vld [vmem:[%s1 + $0x128] sm:$0xff]
  %v69 = vld [vmem:[%s1 + $0x130] sm:$0x1]
  %v70 = vld [vmem:[%s2] sm:$0x1]
  %v72 = vlaneseq
  %v73 = vshrl.u32 %v72, 7
  %v74 = vsub.s32 0, %v73
  %v75 = vrot.slane %v70, %v74
  %vm77 = vcmask 400384
  %v79 = vsel %vm77, %v30, 0
  %vm81 = vcmask 1040384
  %v83 = vsel %vm81, %v69, 0
  %85 = vmatprep.subr.mxu0 0.0
  %86 = vmatpush1.msra.mxu0 %v31
  %87 = vmatprep.subr.mxu0 0.0
  %88 = vmatpush1.msra.mxu0 %v32
  %89 = vmatprep.subr.mxu0 0.0
  %90 = vmatpush1.msra.mxu0 %v33
  %91 = vmatprep.subr.mxu0 0.0
  %92 = vmatpush1.msra.mxu0 %v34
  %93 = vmatprep.subr.mxu0 0.0
  %94 = vmatpush1.msra.mxu0 %v35
  %95 = vmatprep.subr.mxu0 0.0
  %96 = vmatpush1.msra.mxu0 %v36
  %97 = vmatprep.subr.mxu0 0.0
  %98 = vmatpush1.msra.mxu0 %v37
  %99 = vmatprep.subr.mxu0 0.0
  %100 = vmatpush1.msra.mxu0 %v38
  %101 = vmatprep.subr.mxu0 0.0
  %102 = vmatpush1.msra.mxu0 %v39
  %103 = vmatprep.subr.mxu0 0.0
  %104 = vmatpush1.msra.mxu0 %v40
  %105 = vmatprep.subr.mxu0 0.0
  %106 = vmatpush1.msra.mxu0 %v41
  %107 = vmatprep.subr.mxu0 0.0
  %108 = vmatpush1.msra.mxu0 %v42
  %109 = vmatprep.subr.mxu0 0.0
  %110 = vmatpush1.msra.mxu0 %v43
  %111 = vmatprep.subr.mxu0 0.0
  %112 = vmatpush1.msra.mxu0 %v44
  %113 = vmatprep.subr.mxu0 0.0
  %114 = vmatpush1.msra.mxu0 %v45
  %115 = vmatprep.subr.mxu0 0.0
  %116 = vmatpush1.msra.mxu0 %v46
  %117 = vmatprep.subr.mxu0 0.0
  %118 = vmatpush1.msra.mxu0 %v47
  %119 = vmatprep.subr.mxu0 0.0
  %120 = vmatpush1.msra.mxu0 %v48
  %121 = vmatprep.subr.mxu0 0.0
  %122 = vmatpush1.msra.mxu0 %v49
  %123 = vmatprep.subr.mxu0 0.0
  %124 = vmatpush1.msra.mxu0 %v50
  %125 = vmatprep.subr.mxu0 0.0
  %126 = vmatpush1.msra.mxu0 %v51
  %127 = vmatprep.subr.mxu0 0.0
  %128 = vmatpush1.msra.mxu0 %v52
  %129 = vmatprep.subr.mxu0 0.0
  %130 = vmatpush1.msra.mxu0 %v53
  %131 = vmatprep.subr.mxu0 0.0
  %132 = vmatpush1.msra.mxu0 %v54
  %133 = vmatprep.subr.mxu0 0.0
  %134 = vmatpush1.msra.mxu0 %v55
  %135 = vmatprep.subr.mxu0 0.0
  %136 = vmatpush1.msra.mxu0 %v56
  %137 = vmatprep.subr.mxu0 0.0
  %138 = vmatpush1.msra.mxu0 %v57
  %139 = vmatprep.subr.mxu0 0.0
  %140 = vmatpush1.msra.mxu0 %v58
  %141 = vmatprep.subr.mxu0 0.0
  %142 = vmatpush1.msra.mxu0 %v59
  %143 = vmatprep.subr.mxu0 0.0
  %144 = vmatpush1.msra.mxu0 %v60
  %145 = vmatprep.subr.mxu0 0.0
  %146 = vmatpush1.msra.mxu0 %v61
  %147 = vmatprep.subr.mxu0 0.0
  %148 = vmatpush1.msra.mxu0 %v62
  %149 = vmatprep.mubr.f32.mxu0 %v29
  %150 = vmatmul.mubr.f32.gmra.mrb[0].mxu0 %v28
  %v151 = vpop.f32.mrb[0].mxu0
  %v152 = vadd.f32 %v75, %v151
  %v153 = vpop.f32.mrb[0].mxu0
  %154 = vdwg.mxu0
  %155 = vmatprep.subr.mxu0 0.0
  %156 = vmatpush1.msra.mxu0 %v63
  %157 = vmatprep.subr.mxu0 0.0
  %158 = vmatpush1.msra.mxu0 %v64
  %159 = vmatprep.subr.mxu0 0.0
  %160 = vmatpush1.msra.mxu0 %v65
  %161 = vmatprep.subr.mxu0 0.0
  %162 = vmatpush1.msra.mxu0 %v66
  %163 = vmatprep.subr.mxu0 0.0
  %164 = vmatpush1.msra.mxu0 %v67
  %165 = vmatprep.subr.mxu0 0.0
  %166 = vmatpush1.msra.mxu0 %v68
  %167 = vmatprep.subr.mxu0 0.0
  %168 = vmatpush1.msra.mxu0 %v83
  %169 = vmatprep.subr.mxu0 0.0
  %170 = vmatpush1.msra.mxu0 0.0
  %171 = vmatprep.subr.mxu0 0.0
  %172 = vmatpush1.msra.mxu0 0.0
  %173 = vmatprep.subr.mxu0 0.0
  %174 = vmatpush1.msra.mxu0 0.0
  %175 = vmatprep.subr.mxu0 0.0
  %176 = vmatpush1.msra.mxu0 0.0
  %177 = vmatprep.subr.mxu0 0.0
  %178 = vmatpush1.msra.mxu0 0.0
  %179 = vmatprep.subr.mxu0 0.0
  %180 = vmatpush1.msra.mxu0 0.0
  %181 = vmatprep.subr.mxu0 0.0
  %182 = vmatpush1.msra.mxu0 0.0
  %183 = vmatprep.subr.mxu0 0.0
  %184 = vmatpush1.msra.mxu0 0.0
  %185 = vmatprep.subr.mxu0 0.0
  %186 = vmatpush1.msra.mxu0 0.0
  %187 = vmatprep.subr.mxu0 0.0
  %188 = vmatpush1.msra.mxu0 0.0
  %189 = vmatprep.subr.mxu0 0.0
  %190 = vmatpush1.msra.mxu0 0.0
  %191 = vmatprep.subr.mxu0 0.0
  %192 = vmatpush1.msra.mxu0 0.0
  %193 = vmatprep.subr.mxu0 0.0
  %194 = vmatpush1.msra.mxu0 0.0
  %195 = vmatprep.subr.mxu0 0.0
  %196 = vmatpush1.msra.mxu0 0.0
  %197 = vmatprep.subr.mxu0 0.0
  %198 = vmatpush1.msra.mxu0 0.0
  %199 = vmatprep.subr.mxu0 0.0
  %200 = vmatpush1.msra.mxu0 0.0
  %201 = vmatprep.subr.mxu0 0.0
  %202 = vmatpush1.msra.mxu0 0.0
  %203 = vmatprep.subr.mxu0 0.0
  %204 = vmatpush1.msra.mxu0 0.0
  %205 = vmatprep.subr.mxu0 0.0
  %206 = vmatpush1.msra.mxu0 0.0
  %207 = vmatprep.subr.mxu0 0.0
  %208 = vmatpush1.msra.mxu0 0.0
  %209 = vmatprep.subr.mxu0 0.0
  %210 = vmatpush1.msra.mxu0 0.0
  %211 = vmatprep.subr.mxu0 0.0
  %212 = vmatpush1.msra.mxu0 0.0
  %213 = vmatprep.subr.mxu0 0.0
  %214 = vmatpush1.msra.mxu0 0.0
  %215 = vmatprep.subr.mxu0 0.0
  %216 = vmatpush1.msra.mxu0 0.0
  %217 = vmatprep.subr.mxu0 0.0
  %218 = vmatpush1.msra.mxu0 0.0
  %219 = vmatprep.mubr.f32.mxu0 0.0
  %220 = vmatmul.mubr.f32.gmra.mrb[0].mxu0 %v79
  %v221 = vpop.f32.mrb[0].mxu0
  %v222 = vadd.f32 %v152, %v221
  %v223 = vpop.f32.mrb[0].mxu0
  %224 = vdwg.mxu0
  %v225 = vtanh.pop %v222
  %v226 = vld [vmem:[%s3] sm:$0xff]
  %v227 = vld [vmem:[%s3 + $0x8] sm:$0xff]
  %v228 = vld [vmem:[%s3 + $0x10] sm:$0xff]
  %v229 = vld [vmem:[%s3 + $0x18] sm:$0x3f]
  %v230 = vld [vmem:[%s4] sm:$0x1]
  %v232 = vlaneseq
  %v233 = vshrl.u32 %v232, 7
  %v234 = vsub.s32 0, %v233
  %v235 = vrot.slane %v230, %v234
  %vm237 = vcmask 244736
  %v239 = vsel %vm237, %v225, 0
  %vm241 = vcmask 1045504
  %v243 = vsel %vm241, %v229, 0
  %245 = vmatprep.subr.mxu0 0.0
  %246 = vmatpush1.msra.mxu0 %v226
  %247 = vmatprep.subr.mxu0 0.0
  %248 = vmatpush1.msra.mxu0 %v227
  %249 = vmatprep.subr.mxu0 0.0
  %250 = vmatpush1.msra.mxu0 %v228
  %251 = vmatprep.subr.mxu0 0.0
  %252 = vmatpush1.msra.mxu0 %v243
  %253 = vmatprep.subr.mxu0 0.0
  %254 = vmatpush1.msra.mxu0 0.0
  %255 = vmatprep.subr.mxu0 0.0
  %256 = vmatpush1.msra.mxu0 0.0
  %257 = vmatprep.subr.mxu0 0.0
  %258 = vmatpush1.msra.mxu0 0.0
  %259 = vmatprep.subr.mxu0 0.0
  %260 = vmatpush1.msra.mxu0 0.0
  %261 = vmatprep.subr.mxu0 0.0
  %262 = vmatpush1.msra.mxu0 0.0
  %263 = vmatprep.subr.mxu0 0.0
  %264 = vmatpush1.msra.mxu0 0.0
  %265 = vmatprep.subr.mxu0 0.0
  %266 = vmatpush1.msra.mxu0 0.0
  %267 = vmatprep.subr.mxu0 0.0
  %268 = vmatpush1.msra.mxu0 0.0
  %269 = vmatprep.subr.mxu0 0.0
  %270 = vmatpush1.msra.mxu0 0.0
  %271 = vmatprep.subr.mxu0 0.0
  %272 = vmatpush1.msra.mxu0 0.0
  %273 = vmatprep.subr.mxu0 0.0
  %274 = vmatpush1.msra.mxu0 0.0
  %275 = vmatprep.subr.mxu0 0.0
  %276 = vmatpush1.msra.mxu0 0.0
  %277 = vmatprep.subr.mxu0 0.0
  %278 = vmatpush1.msra.mxu0 0.0
  %279 = vmatprep.subr.mxu0 0.0
  %280 = vmatpush1.msra.mxu0 0.0
  %281 = vmatprep.subr.mxu0 0.0
  %282 = vmatpush1.msra.mxu0 0.0
  %283 = vmatprep.subr.mxu0 0.0
  %284 = vmatpush1.msra.mxu0 0.0
  %285 = vmatprep.subr.mxu0 0.0
  %286 = vmatpush1.msra.mxu0 0.0
  %287 = vmatprep.subr.mxu0 0.0
  %288 = vmatpush1.msra.mxu0 0.0
  %289 = vmatprep.subr.mxu0 0.0
  %290 = vmatpush1.msra.mxu0 0.0
  %291 = vmatprep.subr.mxu0 0.0
  %292 = vmatpush1.msra.mxu0 0.0
  %293 = vmatprep.subr.mxu0 0.0
  %294 = vmatpush1.msra.mxu0 0.0
  %295 = vmatprep.subr.mxu0 0.0
  %296 = vmatpush1.msra.mxu0 0.0
  %297 = vmatprep.subr.mxu0 0.0
  %298 = vmatpush1.msra.mxu0 0.0
  %299 = vmatprep.subr.mxu0 0.0
  %300 = vmatpush1.msra.mxu0 0.0
  %301 = vmatprep.subr.mxu0 0.0
  %302 = vmatpush1.msra.mxu0 0.0
  %303 = vmatprep.subr.mxu0 0.0
  %304 = vmatpush1.msra.mxu0 0.0
  %305 = vmatprep.subr.mxu0 0.0
  %306 = vmatpush1.msra.mxu0 0.0
  %307 = vmatprep.subr.mxu0 0.0
  %308 = vmatpush1.msra.mxu0 0.0
  %309 = vmatprep.mubr.f32.mxu0 0.0
  %310 = vmatmul.mubr.f32.gmra.mrb[0].mxu0 %v239
  %v311 = vpop.f32.mrb[0].mxu0
  %v312 = vadd.f32 %v235, %v311
  %v313 = vpop.f32.mrb[0].mxu0
  %314 = vdwg.mxu0
  %v315 = vtanh.pop %v312
  %v316 = vld [vmem:[%s5] sm:$0xff]
  %v317 = vld [vmem:[%s5 + $0x8] sm:$0xff]
  %v318 = vld [vmem:[%s5 + $0x10] sm:$0xff]
  %v319 = vld [vmem:[%s5 + $0x18] sm:$0x3f]
  %v320 = vld [vmem:[#allocation2] sm:$0x1]
  %v322 = vlaneseq
  %v323 = vshrl.u32 %v322, 7
  %v324 = vsub.s32 0, %v323
  %v325 = vrot.slane %v320, %v324
  %v328 = vsel %vm237, %v315, 0
  %v331 = vsel %vm241, %v319, 0
  %333 = vmatprep.subr.mxu0 0.0
  %334 = vmatpush1.msra.mxu0 %v316
  %335 = vmatprep.subr.mxu0 0.0
  %336 = vmatpush1.msra.mxu0 %v317
  %337 = vmatprep.subr.mxu0 0.0
  %338 = vmatpush1.msra.mxu0 %v318
  %339 = vmatprep.subr.mxu0 0.0
  %340 = vmatpush1.msra.mxu0 %v331
  %341 = vmatprep.subr.mxu0 0.0
  %342 = vmatpush1.msra.mxu0 0.0
  %343 = vmatprep.subr.mxu0 0.0
  %344 = vmatpush1.msra.mxu0 0.0
  %345 = vmatprep.subr.mxu0 0.0
  %346 = vmatpush1.msra.mxu0 0.0
  %347 = vmatprep.subr.mxu0 0.0
  %348 = vmatpush1.msra.mxu0 0.0
  %349 = vmatprep.subr.mxu0 0.0
  %350 = vmatpush1.msra.mxu0 0.0
  %351 = vmatprep.subr.mxu0 0.0
  %352 = vmatpush1.msra.mxu0 0.0
  %353 = vmatprep.subr.mxu0 0.0
  %354 = vmatpush1.msra.mxu0 0.0
  %355 = vmatprep.subr.mxu0 0.0
  %356 = vmatpush1.msra.mxu0 0.0
  %357 = vmatprep.subr.mxu0 0.0
  %358 = vmatpush1.msra.mxu0 0.0
  %359 = vmatprep.subr.mxu0 0.0
  %360 = vmatpush1.msra.mxu0 0.0
  %361 = vmatprep.subr.mxu0 0.0
  %362 = vmatpush1.msra.mxu0 0.0
  %363 = vmatprep.subr.mxu0 0.0
  %364 = vmatpush1.msra.mxu0 0.0
  %365 = vmatprep.subr.mxu0 0.0
  %366 = vmatpush1.msra.mxu0 0.0
  %367 = vmatprep.subr.mxu0 0.0
  %368 = vmatpush1.msra.mxu0 0.0
  %369 = vmatprep.subr.mxu0 0.0
  %370 = vmatpush1.msra.mxu0 0.0
  %371 = vmatprep.subr.mxu0 0.0
  %372 = vmatpush1.msra.mxu0 0.0
  %373 = vmatprep.subr.mxu0 0.0
  %374 = vmatpush1.msra.mxu0 0.0
  %375 = vmatprep.subr.mxu0 0.0
  %376 = vmatpush1.msra.mxu0 0.0
  %377 = vmatprep.subr.mxu0 0.0
  %378 = vmatpush1.msra.mxu0 0.0
  %379 = vmatprep.subr.mxu0 0.0
  %380 = vmatpush1.msra.mxu0 0.0
  %381 = vmatprep.subr.mxu0 0.0
  %382 = vmatpush1.msra.mxu0 0.0
  %383 = vmatprep.subr.mxu0 0.0
  %384 = vmatpush1.msra.mxu0 0.0
  %385 = vmatprep.subr.mxu0 0.0
  %386 = vmatpush1.msra.mxu0 0.0
  %387 = vmatprep.subr.mxu0 0.0
  %388 = vmatpush1.msra.mxu0 0.0
  %389 = vmatprep.subr.mxu0 0.0
  %390 = vmatpush1.msra.mxu0 0.0
  %391 = vmatprep.subr.mxu0 0.0
  %392 = vmatpush1.msra.mxu0 0.0
  %393 = vmatprep.subr.mxu0 0.0
  %394 = vmatpush1.msra.mxu0 0.0
  %395 = vmatprep.subr.mxu0 0.0
  %396 = vmatpush1.msra.mxu0 0.0
  %397 = vmatprep.mubr.f32.mxu0 0.0
  %398 = vmatmul.mubr.f32.gmra.mrb[0].mxu0 %v328
  %v399 = vpop.f32.mrb[0].mxu0
  %v400 = vadd.f32 %v325, %v399
  %v401 = vpop.f32.mrb[0].mxu0
  %402 = vdwg.mxu0
  %v403 = vxor.u32 %v400, 2147483648
  %v404 = vmul.f32 %v403, 1.442695
  %v405 = vpow.pop %v404
  %v406 = vadd.f32 %v405, 1.0
  %v407 = vrcp.pop %v406
  %v408 = vmul.f32 1.0, %v407
  %vm409 = vcmask 7168
  %410 = vst.msk [vmem:[%s7] sm:$0xff] %vm409, %v408
  // Predicated region
  $region30: #{tpu_custom_call.1} parent=0 // pred_check
    _
  $region31: #{tpu_custom_call.1} parent=0 // pred_check_branch
    %412 = sbr.rel (0) target = $region33
  $region32: #{tpu_custom_call.1} parent=0 // pred_region
    _
  $region33: #{tpu_custom_call.1} parent=0 // pred_fallthru
    _
  // Predicated region
  $region34: #{tpu_custom_call.1} parent=0 // pred_check
    _
  $region35: #{tpu_custom_call.1} parent=0 // pred_check_branch
    %414 = sbr.rel (0) target = $region37
  $region36: #{tpu_custom_call.1} parent=0 // pred_region
    _
  $region37: #{tpu_custom_call.1} parent=0 // pred_fallthru
    _

</llo_original>
